<compile_context>
chip_gen: v7x
topology: tpu7x:2x2x1
jax: 0.10.0
libtpu: 0.0.40
codegen_flags: <defaults>
</compile_context>

<pallas_src>
import math

import numpy as np

import jax
import jax.numpy as jnp
from jax.experimental import pallas as pl
from jax.experimental.pallas import tpu as pltpu

EPS = 1e-5  # nn.BatchNorm1d default


def _pad_to(n, m=128):
    return ((n + m - 1) // m) * m


def make_mlp_kernel(num_hidden_layers, matmul_dtype):
    """Full DeepliftingMLP forward, everything resident in VMEM.

    Refs:
      x_ref  : (B, P)          matmul_dtype  zero-padded input
      w_ref  : (L+1, P, P)     matmul_dtype  all Linear weights (index L = output)
      ab_ref : (L+1, 2, P)     f32           [i,0]=gamma_i*scale_i,
                                             [i,1]=(beta_i-shift_i)*scale_i,
                                             [L,0]=output bias, [L,1]=unused(0)
      out_ref: (B, P)          f32           lane-dense output
    """
    L = num_hidden_layers

    def kernel(x_ref, w_ref, ab_ref, out_ref):
        # First hidden Linear.  Hidden biases are dropped: with training-mode
        # BatchNorm (batch-stat mean subtraction) they cancel exactly.
        h = jnp.dot(x_ref[...], w_ref[0], preferred_element_type=jnp.float32)

        for i in range(L):
            # --- BatchNorm1d (training), centered two-pass batch statistics ---
            mean = jnp.mean(h, axis=0, keepdims=True)
            d = h - mean
            var = jnp.mean(d * d, axis=0, keepdims=True)
            inv_std = jax.lax.rsqrt(var + EPS)          # EUP slot (free-ish)

            ab_i = ab_ref[i]                            # (2, P) f32
            a = ab_i[0:1, :] * inv_std                  # gamma*scale / std
            b = ab_i[1:2, :]                            # (beta - shift)*scale
            # BN affine + SinActivation folded into one per-feature FMA:
            #   sin(((h-mean)/std * gamma + beta - shift) * scale)
            h = jnp.sin(d * a + b)                      # f32 elementwise (VPU)

            # --- next Linear (hidden i+1, or the output layer at index L) ---
            h = jnp.dot(h.astype(matmul_dtype), w_ref[i + 1],
                        preferred_element_type=jnp.float32)

        out_ref[...] = h + ab_ref[L][0:1, :]            # output-layer bias

    return kernel


def init_params(key, input_size, layer_sizes, output_size):
    """Deterministic PyTorch-Linear-style init (raw, unpadded shapes)."""
    hidden_params = []
    prev = input_size
    for size in layer_sizes:
        key, kw, kb = jax.random.split(key, 3)
        bound = 1.0 / math.sqrt(prev)
        w = jax.random.uniform(kw, (prev, size), jnp.float32, -bound, bound)
        b = jax.random.uniform(kb, (1, size), jnp.float32, -bound, bound)
        gamma = jnp.ones((1, size), jnp.float32)     # BatchNorm1d weight
        beta = jnp.zeros((1, size), jnp.float32)     # BatchNorm1d bias
        scale = jnp.ones((1, 1), jnp.float32)        # SinActivation.scale
        shift = jnp.zeros((1, 1), jnp.float32)       # SinActivation.shift
        hidden_params.append((w, b, gamma, beta, scale, shift))
        prev = size

    key, kw, kb = jax.random.split(key, 3)
    bound = 1.0 / math.sqrt(prev)
    w_out = jax.random.uniform(kw, (prev, output_size), jnp.float32, -bound, bound)
    b_out = jax.random.uniform(kb, (1, output_size), jnp.float32, -bound, bound)
    return hidden_params, (w_out, b_out)


def pack_params(hidden_params, out_params, input_size, matmul_dtype):
    """One-time host-side packing: pad all widths to 128 lanes, stack weights,
    fold scale/shift into the BN rows, fold the output bias into the AB array.
    Zero padding is correctness-safe (padded activation columns only meet zero
    weight rows / zero A,B rows, so they stay exactly zero)."""
    w_out, b_out = out_params
    output_size = int(w_out.shape[1])
    sizes = [input_size] + [int(w.shape[1]) for (w, *_r) in hidden_params]
    P = _pad_to(max(sizes + [output_size]))
    L = len(hidden_params)

    w_stack = np.zeros((L + 1, P, P), np.float32)
    ab = np.zeros((L + 1, 2, P), np.float32)
    for i, (w, _b, g, be, sc, sh) in enumerate(hidden_params):
        w_np = np.asarray(w, np.float32)
        w_stack[i, :w_np.shape[0], :w_np.shape[1]] = w_np
        n = int(g.shape[1])
        scale = float(np.asarray(sc).reshape(-1)[0])
        shift = float(np.asarray(sh).reshape(-1)[0])
        ab[i, 0, :n] = np.asarray(g, np.float32)[0] * scale
        ab[i, 1, :n] = (np.asarray(be, np.float32)[0] - shift) * scale

    w_out_np = np.asarray(w_out, np.float32)
    w_stack[L, :w_out_np.shape[0], :w_out_np.shape[1]] = w_out_np
    ab[L, 0, :output_size] = np.asarray(b_out, np.float32)[0]

    return (jnp.asarray(w_stack, matmul_dtype),
            jnp.asarray(ab, jnp.float32),
            P, L, output_size)


def build_forward(hidden_params, out_params, input_size,
                  matmul_dtype=jnp.bfloat16):
    """Pack parameters ONCE and return a jitted forward(x) closure.

    matmul_dtype=jnp.bfloat16 (default): bf16 MXU operands on all generations.
    matmul_dtype=jnp.float32: accuracy-debug path (tight match to reference).
    """
    assert len(hidden_params) >= 1
    w_stack, ab, P, L, output_size = pack_params(
        hidden_params, out_params, input_size, matmul_dtype)
    kernel = make_mlp_kernel(L, matmul_dtype)
    vmem = pl.BlockSpec(memory_space=pltpu.MemorySpace.VMEM)

    def _forward(x, w_stack, ab):
        batch = x.shape[0]
        # Lane-dense zero padding of the input.  Keep batch a multiple of 8
        # (f32) / 16 (bf16) if it is ever increased, to avoid masked stores.
        x_p = jnp.zeros((batch, P), jnp.float32).at[:, :input_size].set(x)
        x_p = x_p.astype(matmul_dtype)

        # Explicit VMEM budget; the 64 MiB cap is the v7x-safe bound.
        # TODO(synk): if batch ever scales up on v5e/v6e (128 MiB physical),
        # raise this cap toward ~100 MiB before moving to a tiled-BN design.
        operand_bytes = (x_p.size * x_p.dtype.itemsize
                         + w_stack.size * w_stack.dtype.itemsize
                         + ab.size * ab.dtype.itemsize
                         + batch * P * 4)
        vmem_limit = int(min(max(2 * operand_bytes + (2 << 20), 16 << 20),
                             64 << 20))

        out_padded = pl.pallas_call(
            kernel,
            out_shape=jax.ShapeDtypeStruct((batch, P), jnp.float32),
            in_specs=[vmem, vmem, vmem],
            out_specs=vmem,
            compiler_params=pltpu.CompilerParams(vmem_limit_bytes=vmem_limit),
        )(x_p, w_stack, ab)

        # Lane-dense store inside the kernel; slice the real columns here.
        return out_padded[:, :output_size]

    forward_jit = jax.jit(_forward)
    return lambda x: forward_jit(x, w_stack, ab)


def reference_forward(x, hidden_params, out_params):
    """Pure-JAX reference with exact PyTorch semantics (biases included)."""
    h = x
    for (w, b, gamma, beta, scale, shift) in hidden_params:
        h = h @ w + b
        mean = jnp.mean(h, axis=0, keepdims=True)
        var = jnp.mean((h - mean) ** 2, axis=0, keepdims=True)
        h = (h - mean) / jnp.sqrt(var + EPS)
        h = h * gamma + beta
        h = jnp.sin((h - shift[0, 0]) * scale[0, 0])
    w_out, b_out = out_params
    return h @ w_out + b_out


if __name__ == "__main__":
    # Small shapes consistent with the module: batch=8, input_size=16,
    # layer_sizes=(32, 32), output_size=8.
    batch = 8
    input_size = 16
    layer_sizes = (32, 32)
    output_size = 8

    key = jax.random.PRNGKey(0)
    key, kx = jax.random.split(key)
    x = jax.random.normal(kx, (batch, input_size), jnp.float32)

    hidden_params, out_params = init_params(key, input_size, layer_sizes,
                                            output_size)

    ref = reference_forward(x, hidden_params, out_params)

    # Default path: bf16 MXU operands on all generations, f32 elementwise.
    forward_bf16 = build_forward(hidden_params, out_params, input_size)
    out_bf16 = jax.block_until_ready(forward_bf16(x))
    assert out_bf16.shape == (batch, output_size)
    assert jnp.allclose(out_bf16, ref, atol=1e-1, rtol=1e-1), \
        "bf16 mismatch vs reference"
    # Second call exercises the cached jitted executable (no re-packing).
    out_bf16_2 = jax.block_until_ready(forward_bf16(x))
    assert jnp.allclose(out_bf16, out_bf16_2)

    # Accuracy-debug path: f32 matmuls — must match the reference tightly.
    forward_f32 = build_forward(hidden_params, out_params, input_size,
                                matmul_dtype=jnp.float32)
    out_f32 = jax.block_until_ready(forward_f32(x))
    assert out_f32.shape == (batch, output_size)
    assert jnp.allclose(out_f32, ref, atol=1e-4, rtol=1e-4), \
        "f32 mismatch vs reference"

    print("KERNEL_OK")
</pallas_src>

<mosaic_0001>
module attributes {stable_mosaic.version = 11 : i64} {
  func.func @kernel(%arg0: memref<8x128xbf16, #tpu.memory_space<vmem>>, %arg1: memref<3x128x128xbf16, #tpu.memory_space<vmem>>, %arg2: memref<3x2x128xf32, #tpu.memory_space<vmem>>, %arg3: memref<8x128xf32, #tpu.memory_space<vmem>>) attributes {dimension_semantics = [], scalar_prefetch = 0 : i64, scratch_operands = 0 : i64, tpu.core_type = #tpu.core_type<tc>} {
    %c0 = arith.constant 0 : index
    %c0_0 = arith.constant 0 : index
    %0 = vector.load %arg0[%c0, %c0_0] : memref<8x128xbf16, #tpu.memory_space<vmem>>, vector<8x128xbf16>
    %c0_1 = arith.constant 0 : index
    %c0_2 = arith.constant 0 : index
    %c0_3 = arith.constant 0 : index
    %1 = vector.load %arg1[%c0_1, %c0_2, %c0_3] : memref<3x128x128xbf16, #tpu.memory_space<vmem>>, vector<1x128x128xbf16>
    %2 = vector.shape_cast %1 : vector<1x128x128xbf16> to vector<128x128xbf16>
    %cst = arith.constant dense<0.000000e+00> : vector<8x128xf32>
    %3 = tpu.matmul %0, %2, %cst {dimension_numbers = #tpu.dot_dimension_numbers<[1], [0], [0], [1], [0, 0, 1, 1], [], []>} : vector<8x128xbf16>, vector<128x128xbf16>, vector<8x128xf32> -> vector<8x128xf32>
    %cst_4 = arith.constant dense<0.000000e+00> : vector<128xf32>
    %4 = vector.multi_reduction <add>, %3, %cst_4 [0] : vector<8x128xf32> to vector<128xf32>
    %5 = vector.shape_cast %4 : vector<128xf32> to vector<1x128xf32>
    %cst_5 = arith.constant 8.000000e+00 : f32
    %6 = vector.broadcast %cst_5 : f32 to vector<1x128xf32>
    %7 = arith.divf %5, %6 : vector<1x128xf32>
    %8 = vector.broadcast %7 : vector<1x128xf32> to vector<8x128xf32>
    %9 = arith.subf %3, %8 : vector<8x128xf32>
    %10 = arith.mulf %9, %9 : vector<8x128xf32>
    %cst_6 = arith.constant dense<0.000000e+00> : vector<128xf32>
    %11 = vector.multi_reduction <add>, %10, %cst_6 [0] : vector<8x128xf32> to vector<128xf32>
    %12 = vector.shape_cast %11 : vector<128xf32> to vector<1x128xf32>
    %cst_7 = arith.constant 8.000000e+00 : f32
    %13 = vector.broadcast %cst_7 : f32 to vector<1x128xf32>
    %14 = arith.divf %12, %13 : vector<1x128xf32>
    %cst_8 = arith.constant 9.99999974E-6 : f32
    %15 = vector.broadcast %cst_8 : f32 to vector<1x128xf32>
    %16 = arith.addf %14, %15 : vector<1x128xf32>
    %17 = math.rsqrt %16 : vector<1x128xf32>
    %c0_9 = arith.constant 0 : index
    %c0_10 = arith.constant 0 : index
    %c0_11 = arith.constant 0 : index
    %18 = vector.load %arg2[%c0_9, %c0_10, %c0_11] : memref<3x2x128xf32, #tpu.memory_space<vmem>>, vector<1x2x128xf32>
    %19 = vector.shape_cast %18 : vector<1x2x128xf32> to vector<2x128xf32>
    %20 = vector.extract_strided_slice %19 {offsets = [0, 0], sizes = [1, 128], strides = [1, 1]} : vector<2x128xf32> to vector<1x128xf32>
    %21 = arith.mulf %20, %17 : vector<1x128xf32>
    %22 = vector.extract_strided_slice %19 {offsets = [1, 0], sizes = [1, 128], strides = [1, 1]} : vector<2x128xf32> to vector<1x128xf32>
    %23 = vector.broadcast %21 : vector<1x128xf32> to vector<8x128xf32>
    %24 = arith.mulf %9, %23 : vector<8x128xf32>
    %25 = vector.broadcast %22 : vector<1x128xf32> to vector<8x128xf32>
    %26 = arith.addf %24, %25 : vector<8x128xf32>
    %27 = math.sin %26 : vector<8x128xf32>
    %28 = arith.truncf %27 : vector<8x128xf32> to vector<8x128xbf16>
    %c1 = arith.constant 1 : index
    %c0_12 = arith.constant 0 : index
    %c0_13 = arith.constant 0 : index
    %29 = vector.load %arg1[%c1, %c0_12, %c0_13] : memref<3x128x128xbf16, #tpu.memory_space<vmem>>, vector<1x128x128xbf16>
    %30 = vector.shape_cast %29 : vector<1x128x128xbf16> to vector<128x128xbf16>
    %cst_14 = arith.constant dense<0.000000e+00> : vector<8x128xf32>
    %31 = tpu.matmul %28, %30, %cst_14 {dimension_numbers = #tpu.dot_dimension_numbers<[1], [0], [0], [1], [0, 0, 1, 1], [], []>} : vector<8x128xbf16>, vector<128x128xbf16>, vector<8x128xf32> -> vector<8x128xf32>
    %cst_15 = arith.constant dense<0.000000e+00> : vector<128xf32>
    %32 = vector.multi_reduction <add>, %31, %cst_15 [0] : vector<8x128xf32> to vector<128xf32>
    %33 = vector.shape_cast %32 : vector<128xf32> to vector<1x128xf32>
    %cst_16 = arith.constant 8.000000e+00 : f32
    %34 = vector.broadcast %cst_16 : f32 to vector<1x128xf32>
    %35 = arith.divf %33, %34 : vector<1x128xf32>
    %36 = vector.broadcast %35 : vector<1x128xf32> to vector<8x128xf32>
    %37 = arith.subf %31, %36 : vector<8x128xf32>
    %38 = arith.mulf %37, %37 : vector<8x128xf32>
    %cst_17 = arith.constant dense<0.000000e+00> : vector<128xf32>
    %39 = vector.multi_reduction <add>, %38, %cst_17 [0] : vector<8x128xf32> to vector<128xf32>
    %40 = vector.shape_cast %39 : vector<128xf32> to vector<1x128xf32>
    %cst_18 = arith.constant 8.000000e+00 : f32
    %41 = vector.broadcast %cst_18 : f32 to vector<1x128xf32>
    %42 = arith.divf %40, %41 : vector<1x128xf32>
    %cst_19 = arith.constant 9.99999974E-6 : f32
    %43 = vector.broadcast %cst_19 : f32 to vector<1x128xf32>
    %44 = arith.addf %42, %43 : vector<1x128xf32>
    %45 = math.rsqrt %44 : vector<1x128xf32>
    %c1_20 = arith.constant 1 : index
    %c0_21 = arith.constant 0 : index
    %c0_22 = arith.constant 0 : index
    %46 = vector.load %arg2[%c1_20, %c0_21, %c0_22] : memref<3x2x128xf32, #tpu.memory_space<vmem>>, vector<1x2x128xf32>
    %47 = vector.shape_cast %46 : vector<1x2x128xf32> to vector<2x128xf32>
    %48 = vector.extract_strided_slice %47 {offsets = [0, 0], sizes = [1, 128], strides = [1, 1]} : vector<2x128xf32> to vector<1x128xf32>
    %49 = arith.mulf %48, %45 : vector<1x128xf32>
    %50 = vector.extract_strided_slice %47 {offsets = [1, 0], sizes = [1, 128], strides = [1, 1]} : vector<2x128xf32> to vector<1x128xf32>
    %51 = vector.broadcast %49 : vector<1x128xf32> to vector<8x128xf32>
    %52 = arith.mulf %37, %51 : vector<8x128xf32>
    %53 = vector.broadcast %50 : vector<1x128xf32> to vector<8x128xf32>
    %54 = arith.addf %52, %53 : vector<8x128xf32>
    %55 = math.sin %54 : vector<8x128xf32>
    %56 = arith.truncf %55 : vector<8x128xf32> to vector<8x128xbf16>
    %c2 = arith.constant 2 : index
    %c0_23 = arith.constant 0 : index
    %c0_24 = arith.constant 0 : index
    %57 = vector.load %arg1[%c2, %c0_23, %c0_24] : memref<3x128x128xbf16, #tpu.memory_space<vmem>>, vector<1x128x128xbf16>
    %58 = vector.shape_cast %57 : vector<1x128x128xbf16> to vector<128x128xbf16>
    %cst_25 = arith.constant dense<0.000000e+00> : vector<8x128xf32>
    %59 = tpu.matmul %56, %58, %cst_25 {dimension_numbers = #tpu.dot_dimension_numbers<[1], [0], [0], [1], [0, 0, 1, 1], [], []>} : vector<8x128xbf16>, vector<128x128xbf16>, vector<8x128xf32> -> vector<8x128xf32>
    %c2_26 = arith.constant 2 : index
    %c0_27 = arith.constant 0 : index
    %c0_28 = arith.constant 0 : index
    %60 = vector.load %arg2[%c2_26, %c0_27, %c0_28] : memref<3x2x128xf32, #tpu.memory_space<vmem>>, vector<1x2x128xf32>
    %61 = vector.shape_cast %60 : vector<1x2x128xf32> to vector<2x128xf32>
    %62 = vector.extract_strided_slice %61 {offsets = [0, 0], sizes = [1, 128], strides = [1, 1]} : vector<2x128xf32> to vector<1x128xf32>
    %63 = vector.broadcast %62 : vector<1x128xf32> to vector<8x128xf32>
    %64 = arith.addf %59, %63 : vector<8x128xf32>
    %c0_29 = arith.constant 0 : index
    %c0_30 = arith.constant 0 : index
    %65 = vector.load %arg3[%c0_29, %c0_30] : memref<8x128xf32, #tpu.memory_space<vmem>>, vector<8x128xf32>
    tpu.vector_store %arg3[%c0_29, %c0_30], %64 {strides = array<i32>} : memref<8x128xf32, #tpu.memory_space<vmem>>, vector<8x128xf32>,
    return
  }
}

</mosaic_0001>

<llo_original>
// kernel: _forward.1
$region0: #{_forward.1}
  #allocation0 [shape = 'u32[]', space=smem, size = 0x4, offset = 0x4, fixed_abs, tag = 'smem constant byte address 0x4 - core index']
  #allocation1 [shape = 'u32[144,128]{1,0:T(1,128)}', space=vmem, size = 0x12000, scoped, tag = 'internal scratch']
  %s0 = inlined_call_operand.vmem [shape: bf16[8,128], index: 0, kind: input, shape index: {}]
  %s1 = inlined_call_operand.hbm [shape: bf16[3,128,128], index: 1, kind: input, shape index: {}]
  %s2 = inlined_call_operand.vmem [shape: f32[3,2,128], index: 2, kind: input, shape index: {}]
  %s3 = inlined_call_operand.hbm [shape: f32[8,128], index: 3, kind: output, shape index: {}]
  %s4 = sld [smem:[#allocation0]]
  $region26: #{_forward.1} parent=0
    _
  %s6 = ssub.s32 1, %s4
  %s7 = scalar_select 0, %s6, %s4
  $region1: #{_forward.1} parent=0
    #allocation2 [shape = 'u8[98304]{0}', space=vmem, size = 0x18000, scoped, tag = 'input window, operand 1, single buffered']
    #allocation3 [shape = 's32[1]{0}', space=sflag, size = 0x4, scoped, tag = 'scoped memory for _forward.1']
    #allocation4 [shape = 's32[1]{0}', space=sflag, size = 0x4, scoped, tag = 'scoped memory for _forward.1']
    #allocation5 [shape = 'u8[4096]{0}', space=vmem, size = 0x1000, scoped, tag = 'output window, operand 0, single buffered']
    %8 = vsyncpa [#allocation3], 0
    %9 = vsyncpa [#allocation4], 0
    // Predicated region
    $region2: #{_forward.1} parent=1 // pred_check
      _
    $region3: #{_forward.1} parent=1 // pred_check_branch
      %11 = sbr.rel (0) target = $region5
    $region4: #{_forward.1} parent=1 // pred_region
      _
    $region5: #{_forward.1} parent=1 // pred_fallthru
      _
    // Predicated region
    $region6: #{_forward.1} parent=1 // pred_check
      _
    $region7: #{_forward.1} parent=1 // pred_check_branch
      %13 = sbr.rel (0) target = $region9
    $region8: #{_forward.1} parent=1 // pred_region
      %s15 = ssub.s32 3072, 3072
      %16 = vsyncadd [#allocation3], %s15
      %s17 = sshll.u32 [#allocation2], 4
      %s18 = int_to_ptr.vmem [resolvable:$true] %s17
      %23 = dma.hbm_to_vmem [thread:$0]  %s1, 3072, %s18, [#allocation3], 64, 64, 4
    $region9: #{_forward.1} parent=1 // pred_fallthru
      _
    // Predicated region
    $region10: #{_forward.1} parent=1 // pred_check
      _
    $region11: #{_forward.1} parent=1 // pred_check_branch
      %25 = sbr.rel (0) target = $region13
    $region12: #{_forward.1} parent=1 // pred_region
      _
    $region13: #{_forward.1} parent=1 // pred_fallthru
      _
    // Predicated region
    $region14: #{_forward.1} parent=1 // pred_check
      _
    $region15: #{_forward.1} parent=1 // pred_check_branch
      %27 = sbr.rel (0) target = $region17
    $region16: #{_forward.1} parent=1 // pred_region
      %28 = dma.done [#allocation3], 3072
    $region17: #{_forward.1} parent=1 // pred_fallthru
      _
    %v30 = vld [vmem:[%s0] sm:$0xf]
    %v31 = vld [vmem:[#allocation2] sm:$0xf]
    %v32 = vld [vmem:[#allocation2 + $0x4] sm:$0xf]
    %v33 = vld [vmem:[#allocation2 + $0x8] sm:$0xf]
    %v34 = vld [vmem:[#allocation2 + $0xc] sm:$0xf]
    %v35 = vld [vmem:[#allocation2 + $0x10] sm:$0xf]
    %v36 = vld [vmem:[#allocation2 + $0x14] sm:$0xf]
    %v37 = vld [vmem:[#allocation2 + $0x18] sm:$0xf]
    %v38 = vld [vmem:[#allocation2 + $0x1c] sm:$0xf]
    %v39 = vld [vmem:[#allocation2 + $0x20] sm:$0xf]
    %v40 = vld [vmem:[#allocation2 + $0x24] sm:$0xf]
    %v41 = vld [vmem:[#allocation2 + $0x28] sm:$0xf]
    %v42 = vld [vmem:[#allocation2 + $0x2c] sm:$0xf]
    %v43 = vld [vmem:[#allocation2 + $0x30] sm:$0xf]
    %v44 = vld [vmem:[#allocation2 + $0x34] sm:$0xf]
    %v45 = vld [vmem:[#allocation2 + $0x38] sm:$0xf]
    %v46 = vld [vmem:[#allocation2 + $0x3c] sm:$0xf]
    %v63 = vunpack.c.l.b16 %v31
    %v64 = vunpack.c.l.b16 %v32
    %v65 = vunpack.c.l.b16 %v33
    %v66 = vunpack.c.l.b16 %v34
    %v67 = vunpack.c.l.b16 %v35
    %v68 = vunpack.c.l.b16 %v36
    %v69 = vunpack.c.l.b16 %v37
    %v70 = vunpack.c.l.b16 %v38
    %v71 = vunpack.c.l.b16 %v39
    %v72 = vunpack.c.l.b16 %v40
    %v73 = vunpack.c.l.b16 %v41
    %v74 = vunpack.c.l.b16 %v42
    %v75 = vunpack.c.l.b16 %v43
    %v76 = vunpack.c.l.b16 %v44
    %v77 = vunpack.c.l.b16 %v45
    %v78 = vunpack.c.l.b16 %v46
    %v79 = vpack.c.b16 %v64, %v63
    %v80 = vpack.c.b16 %v66, %v65
    %v81 = vpack.c.b16 %v68, %v67
    %v82 = vpack.c.b16 %v70, %v69
    %v83 = vpack.c.b16 %v72, %v71
    %v84 = vpack.c.b16 %v74, %v73
    %v85 = vpack.c.b16 %v76, %v75
    %v86 = vpack.c.b16 %v78, %v77
    %95 = vmatprep.subr.bf16.mxu0 0
    %96 = vmatpush1.bf16.msra.mxu0 %v79
    %97 = vmatprep.subr.bf16.mxu0 0
    %98 = vmatpush1.bf16.msra.mxu0 %v80
    %99 = vmatprep.subr.bf16.mxu0 0
    %100 = vmatpush1.bf16.msra.mxu0 %v81
    %101 = vmatprep.subr.bf16.mxu0 0
    %102 = vmatpush1.bf16.msra.mxu0 %v82
    %103 = vmatprep.subr.bf16.mxu0 0
    %104 = vmatpush1.bf16.msra.mxu0 %v83
    %105 = vmatprep.subr.bf16.mxu0 0
    %106 = vmatpush1.bf16.msra.mxu0 %v84
    %107 = vmatprep.subr.bf16.mxu0 0
    %108 = vmatpush1.bf16.msra.mxu0 %v85
    %109 = vmatprep.subr.bf16.mxu0 0
    %110 = vmatpush1.bf16.msra.mxu0 %v86
    %111 = vmatprep.subr.bf16.mxu0 0
    %112 = vmatpush1.bf16.msra.mxu0 0
    %113 = vmatprep.subr.bf16.mxu0 0
    %114 = vmatpush1.bf16.msra.mxu0 0
    %115 = vmatprep.subr.bf16.mxu0 0
    %116 = vmatpush1.bf16.msra.mxu0 0
    %117 = vmatprep.subr.bf16.mxu0 0
    %118 = vmatpush1.bf16.msra.mxu0 0
    %119 = vmatprep.subr.bf16.mxu0 0
    %120 = vmatpush1.bf16.msra.mxu0 0
    %121 = vmatprep.subr.bf16.mxu0 0
    %122 = vmatpush1.bf16.msra.mxu0 0
    %123 = vmatprep.subr.bf16.mxu0 0
    %124 = vmatpush1.bf16.msra.mxu0 0
    %125 = vmatprep.subr.bf16.mxu0 0
    %126 = vmatpush1.bf16.msra.mxu0 0
    %127 = vmatprep.mubr.bf16.mxu0 0
    %128 = vmatmul.mubr.bf16.gmra.mrb[0].mxu0 %v30
    %v129 = vpop.f32.mrb[0].mxu0
    %v130 = vadd.f32 0.0, %v129
    %v131 = vpop.f32.mrb[0].mxu0
    %v132 = vpop.f32.mrb[0].mxu0
    %v133 = vpop.f32.mrb[0].mxu0
    %134 = vdwg.mxu0
    %v135 = vrot.slane %v130, 4
    %v136 = vadd.f32 %v130, %v135
    %v137 = vrot.slane %v136, 2
    %v138 = vadd.f32 %v136, %v137
    %v139 = vrot.slane %v138, 1
    %v140 = vadd.f32 %v138, %v139
    %v141 = vrcp.pop 8.0
    %v142 = vmul.f32 %v140, %v141
    %v143 = vsub.f32 %v130, %v142
    %v144 = vmul.f32 %v143, %v143
    %v145 = vrot.slane %v144, 4
    %v146 = vadd.f32 %v144, %v145
    %v147 = vrot.slane %v146, 2
    %v148 = vadd.f32 %v146, %v147
    %v149 = vrot.slane %v148, 1
    %v150 = vadd.f32 %v148, %v149
    %v151 = vmul.f32 %v150, %v141
    %v152 = vadd.f32 %v151, 1e-05
    %v153 = vrsqrt.pop %v152
    %v154 = vld [vmem:[%s2] sm:$0x3]
    %v155 = vmul.f32 %v154, %v153
    %v156 = vlaneseq
    %v157 = vshrl.u32 %v156, 7
    %v158 = vsub.s32 0, %v157
    %v159 = vrot.slane %v155, %v158
    %v160 = vmul.f32 %v143, %v159
    %v161 = vlaneseq
    %v162 = vshrl.u32 %v161, 7
    %v163 = vsub.s32 1, %v162
    %v164 = vrot.slane %v154, %v163
    %v165 = vadd.f32 %v160, %v164
    %v166 = vand.u32 2147483647, %v165
    %vm167 = vcmp.le.f32.partialorder %v166, 0.7853982
    %vm168 = vcmp.lt.s32.totalorder %v165, 0
    %v169 = vand.u32 %v165, 2139095040
    %v170 = vshrl.u32 %v169, 23
    %v171 = vsub.s32 %v170, 127
    %v172 = vand.u32 2147483647, %v165
    %v173 = vand.u32 %v172, 8388607
    %v174 = vor.u32 %v173, 8388608
    %v175 = vsub.s32 0, %v174
    %v176 = vadd.s32 %v171, 1
    %vm177 = vcmp.gt.s32.totalorder %v176, 0
    %v178 = vsel %vm177, %v176, 0
    %v179 = vshrl.u32 %v178, 5
    %v180 = vand.u32 %v178, 31
    %v181 = vsub.s32 32, %v180
    %v182 = vshrl.u32 683565275, %v181
    %v183 = vshll.u32 683565275, %v180
    %v184 = vshrl.u32 2475754826, %v181
    %v185 = vor.u32 %v183, %v184
    %v186 = vshll.u32 2475754826, %v180
    %v187 = vshrl.u32 2131351028, %v181
    %v188 = vor.u32 %v186, %v187
    %v189 = vshll.u32 2131351028, %v180
    %v190 = vshrl.u32 2102212464, %v181
    %v191 = vor.u32 %v189, %v190
    %v192 = vshll.u32 2102212464, %v180
    %v193 = vshrl.u32 920167782, %v181
    %v194 = vor.u32 %v192, %v193
    %v195 = vshll.u32 920167782, %v180
    %v196 = vshrl.u32 1326507024, %v181
    %v197 = vor.u32 %v195, %v196
    %vm198 = vcmp.lt.s32.totalorder %v179, 1
    %vm199 = vcmp.lt.s32.totalorder %v179, 2
    %vm200 = vcmp.lt.s32.totalorder %v179, 3
    %vm201 = vcmp.lt.s32.totalorder %v179, 4
    %v202 = vsel %vm198, %v182, %v185
    %v203 = vsel %vm201, %v191, 2102212464
    %v204 = vsel %vm200, %v188, %v203
    %v205 = vsel %vm199, %v202, %v204
    %v206 = vsel %vm198, %v185, %v188
    %v207 = vsel %vm201, %v194, 920167782
    %v208 = vsel %vm200, %v191, %v207
    %v209 = vsel %vm199, %v206, %v208
    %v210 = vsel %vm198, %v188, %v191
    %v211 = vsel %vm201, %v197, 1326507024
    %v212 = vsel %vm200, %v194, %v211
    %v213 = vsel %vm199, %v210, %v212
    %v214 = vshll.u32 %v174, 8
    %v215 = vmul.u32.u64.compose %v214, %v213
    %v216 = vextract.low.u32 %v215
    %v217 = vextract.high.u32 %v215
    %v218 = vmul.u32.u64.compose %v214, %v209
    %v219 = vextract.low.u32 %v218
    %v220 = vextract.high.u32 %v218
    %v221 = vmul.u32 %v214, %v205
    %v222 = vadd.s32 %v217, %v219
    %vm223 = vc.u32 %v217, %v219
    %v224 = vadd.s32 %v220, 1
    %v225 = vsel %vm223, %v224, %v220
    %v226 = vadd.s32 %v221, %v225
    %v227 = vadd.s32 %v226, 536870912
    %v228 = vshrl.u32 %v227, 30
    %v229 = vshll.u32 %v228, 30
    %v230 = vsub.s32 %v226, %v229
    %vm231 = vcmp.lt.s32.totalorder %v230, 0
    %v232 = vsub.s32 0, %v230
    %v233 = vsel %vm231, %v232, %v230
    %v234 = vclz %v233
    %v235 = vsub.s32 %v234, 2
    %vm236 = vcmp.gt.s32.totalorder 0, %v235
    %v237 = vsel %vm236, 0, %v235
    %v238 = vsub.s32 32, %v237
    %v239 = vshll.u32 %v230, %v237
    %v240 = vshrl.u32 %v222, %v238
    %v241 = vor.u32 %v239, %v240
    %v242 = vsub.s32 4294967266, %v237
    %v243 = vadd.s32 %v242, 127
    %v244 = vshll.u32 %v243, 23
    %v245 = vor.u32 4788187, %v244
    %v246 = vand.u32 2147483647, %v245
    %v248 = vcvt.s32.f32 %v241
    %v249 = vmul.f32 %v248, %v246
    %v250 = vxor.u32 %v249, 2147483648
    %v251 = vsel %vm168, %v250, %v249
    %v252 = vsub.s32 4, %v228
    %v253 = vsel %vm168, %v252, %v228
    %v254 = vsel %vm167, %v165, %v251
    %v255 = vsel %vm167, 0, %v253
    %v256 = vcosq.f32.pop %v254
    %v257 = vsinq.f32.pop %v254
    %vm258 = vweird.f32 %v165
    %v259 = vadd.s32 %v255, 3
    %v260 = vand.u32 %v259, 3
    %vm261 = vcmp.lt.s32.totalorder %v260, 2
    %vm262 = vcmp.eq.s32.totalorder %v260, 0
    %v263 = vxor.u32 %v257, 2147483648
    %v264 = vsel %vm262, %v256, %v263
    %vm265 = vcmp.eq.s32.totalorder %v260, 2
    %v266 = vxor.u32 %v256, 2147483648
    %v267 = vsel %vm265, %v266, %v257
    %v268 = vsel %vm261, %v264, %v267
    %v269 = vsel %vm258, nan, %v268
    %v270 = vpack.c.bf16 %v269, %v269
    %s271 = scalar_lea.vmem [#allocation2], 64
    %v272 = vld [vmem:[%s271] sm:$0xf]
    %v273 = vld [vmem:[%s271 + $0x4] sm:$0xf]
    %v274 = vld [vmem:[%s271 + $0x8] sm:$0xf]
    %v275 = vld [vmem:[%s271 + $0xc] sm:$0xf]
    %v276 = vld [vmem:[%s271 + $0x10] sm:$0xf]
    %v277 = vld [vmem:[%s271 + $0x14] sm:$0xf]
    %v278 = vld [vmem:[%s271 + $0x18] sm:$0xf]
    %v279 = vld [vmem:[%s271 + $0x1c] sm:$0xf]
    %v280 = vld [vmem:[%s271 + $0x20] sm:$0xf]
    %v281 = vld [vmem:[%s271 + $0x24] sm:$0xf]
    %v282 = vld [vmem:[%s271 + $0x28] sm:$0xf]
    %v283 = vld [vmem:[%s271 + $0x2c] sm:$0xf]
    %v284 = vld [vmem:[%s271 + $0x30] sm:$0xf]
    %v285 = vld [vmem:[%s271 + $0x34] sm:$0xf]
    %v286 = vld [vmem:[%s271 + $0x38] sm:$0xf]
    %v287 = vld [vmem:[%s271 + $0x3c] sm:$0xf]
    %v304 = vunpack.c.l.b16 %v272
    %v305 = vunpack.c.l.b16 %v273
    %v306 = vunpack.c.l.b16 %v274
    %v307 = vunpack.c.l.b16 %v275
    %v308 = vunpack.c.l.b16 %v276
    %v309 = vunpack.c.l.b16 %v277
    %v310 = vunpack.c.l.b16 %v278
    %v311 = vunpack.c.l.b16 %v279
    %v312 = vunpack.c.l.b16 %v280
    %v313 = vunpack.c.l.b16 %v281
    %v314 = vunpack.c.l.b16 %v282
    %v315 = vunpack.c.l.b16 %v283
    %v316 = vunpack.c.l.b16 %v284
    %v317 = vunpack.c.l.b16 %v285
    %v318 = vunpack.c.l.b16 %v286
    %v319 = vunpack.c.l.b16 %v287
    %v320 = vpack.c.b16 %v305, %v304
    %v321 = vpack.c.b16 %v307, %v306
    %v322 = vpack.c.b16 %v309, %v308
    %v323 = vpack.c.b16 %v311, %v310
    %v324 = vpack.c.b16 %v313, %v312
    %v325 = vpack.c.b16 %v315, %v314
    %v326 = vpack.c.b16 %v317, %v316
    %v327 = vpack.c.b16 %v319, %v318
    %336 = vmatprep.subr.bf16.mxu0 0
    %337 = vmatpush1.bf16.msra.mxu0 %v320
    %338 = vmatprep.subr.bf16.mxu0 0
    %339 = vmatpush1.bf16.msra.mxu0 %v321
    %340 = vmatprep.subr.bf16.mxu0 0
    %341 = vmatpush1.bf16.msra.mxu0 %v322
    %342 = vmatprep.subr.bf16.mxu0 0
    %343 = vmatpush1.bf16.msra.mxu0 %v323
    %344 = vmatprep.subr.bf16.mxu0 0
    %345 = vmatpush1.bf16.msra.mxu0 %v324
    %346 = vmatprep.subr.bf16.mxu0 0
    %347 = vmatpush1.bf16.msra.mxu0 %v325
    %348 = vmatprep.subr.bf16.mxu0 0
    %349 = vmatpush1.bf16.msra.mxu0 %v326
    %350 = vmatprep.subr.bf16.mxu0 0
    %351 = vmatpush1.bf16.msra.mxu0 %v327
    %352 = vmatprep.subr.bf16.mxu0 0
    %353 = vmatpush1.bf16.msra.mxu0 0
    %354 = vmatprep.subr.bf16.mxu0 0
    %355 = vmatpush1.bf16.msra.mxu0 0
    %356 = vmatprep.subr.bf16.mxu0 0
    %357 = vmatpush1.bf16.msra.mxu0 0
    %358 = vmatprep.subr.bf16.mxu0 0
    %359 = vmatpush1.bf16.msra.mxu0 0
    %360 = vmatprep.subr.bf16.mxu0 0
    %361 = vmatpush1.bf16.msra.mxu0 0
    %362 = vmatprep.subr.bf16.mxu0 0
    %363 = vmatpush1.bf16.msra.mxu0 0
    %364 = vmatprep.subr.bf16.mxu0 0
    %365 = vmatpush1.bf16.msra.mxu0 0
    %366 = vmatprep.subr.bf16.mxu0 0
    %367 = vmatpush1.bf16.msra.mxu0 0
    %368 = vmatprep.mubr.bf16.mxu0 0
    %369 = vmatmul.mubr.bf16.gmra.mrb[0].mxu0 %v270
    %v370 = vpop.f32.mrb[0].mxu0
    %v371 = vadd.f32 0.0, %v370
    %v372 = vpop.f32.mrb[0].mxu0
    %v373 = vpop.f32.mrb[0].mxu0
    %v374 = vpop.f32.mrb[0].mxu0
    %375 = vdwg.mxu0
    %v376 = vrot.slane %v371, 4
    %v377 = vadd.f32 %v371, %v376
    %v378 = vrot.slane %v377, 2
    %v379 = vadd.f32 %v377, %v378
    %v380 = vrot.slane %v379, 1
    %v381 = vadd.f32 %v379, %v380
    %v382 = vmul.f32 %v381, %v141
    %v383 = vsub.f32 %v371, %v382
    %v384 = vmul.f32 %v383, %v383
    %v385 = vrot.slane %v384, 4
    %v386 = vadd.f32 %v384, %v385
    %v387 = vrot.slane %v386, 2
    %v388 = vadd.f32 %v386, %v387
    %v389 = vrot.slane %v388, 1
    %v390 = vadd.f32 %v388, %v389
    %v391 = vmul.f32 %v390, %v141
    %v392 = vadd.f32 %v391, 1e-05
    %v393 = vrsqrt.pop %v392
    %s394 = scalar_lea.vmem %s2, 2
    %v395 = vld [vmem:[%s394] sm:$0x3]
    %v396 = vmul.f32 %v395, %v393
    %v397 = vlaneseq
    %v398 = vshrl.u32 %v397, 7
    %v399 = vsub.s32 0, %v398
    %v400 = vrot.slane %v396, %v399
    %v401 = vmul.f32 %v383, %v400
    %v402 = vlaneseq
    %v403 = vshrl.u32 %v402, 7
    %v404 = vsub.s32 1, %v403
    %v405 = vrot.slane %v395, %v404
    %v406 = vadd.f32 %v401, %v405
    %v407 = vand.u32 2147483647, %v406
    %vm408 = vcmp.le.f32.partialorder %v407, 0.7853982
    %vm409 = vcmp.lt.s32.totalorder %v406, 0
    %v410 = vand.u32 %v406, 2139095040
    %v411 = vshrl.u32 %v410, 23
    %v412 = vsub.s32 %v411, 127
    %v413 = vand.u32 2147483647, %v406
    %v414 = vand.u32 %v413, 8388607
    %v415 = vor.u32 %v414, 8388608
    %v416 = vsub.s32 0, %v415
    %v417 = vadd.s32 %v412, 1
    %vm418 = vcmp.gt.s32.totalorder %v417, 0
    %v419 = vsel %vm418, %v417, 0
    %v420 = vshrl.u32 %v419, 5
    %v421 = vand.u32 %v419, 31
    %v422 = vsub.s32 32, %v421
    %v423 = vshrl.u32 683565275, %v422
    %v424 = vshll.u32 683565275, %v421
    %v425 = vshrl.u32 2475754826, %v422
    %v426 = vor.u32 %v424, %v425
    %v427 = vshll.u32 2475754826, %v421
    %v428 = vshrl.u32 2131351028, %v422
    %v429 = vor.u32 %v427, %v428
    %v430 = vshll.u32 2131351028, %v421
    %v431 = vshrl.u32 2102212464, %v422
    %v432 = vor.u32 %v430, %v431
    %v433 = vshll.u32 2102212464, %v421
    %v434 = vshrl.u32 920167782, %v422
    %v435 = vor.u32 %v433, %v434
    %v436 = vshll.u32 920167782, %v421
    %v437 = vshrl.u32 1326507024, %v422
    %v438 = vor.u32 %v436, %v437
    %vm439 = vcmp.lt.s32.totalorder %v420, 1
    %vm440 = vcmp.lt.s32.totalorder %v420, 2
    %vm441 = vcmp.lt.s32.totalorder %v420, 3
    %vm442 = vcmp.lt.s32.totalorder %v420, 4
    %v443 = vsel %vm439, %v423, %v426
    %v444 = vsel %vm442, %v432, 2102212464
    %v445 = vsel %vm441, %v429, %v444
    %v446 = vsel %vm440, %v443, %v445
    %v447 = vsel %vm439, %v426, %v429
    %v448 = vsel %vm442, %v435, 920167782
    %v449 = vsel %vm441, %v432, %v448
    %v450 = vsel %vm440, %v447, %v449
    %v451 = vsel %vm439, %v429, %v432
    %v452 = vsel %vm442, %v438, 1326507024
    %v453 = vsel %vm441, %v435, %v452
    %v454 = vsel %vm440, %v451, %v453
    %v455 = vshll.u32 %v415, 8
    %v456 = vmul.u32.u64.compose %v455, %v454
    %v457 = vextract.low.u32 %v456
    %v458 = vextract.high.u32 %v456
    %v459 = vmul.u32.u64.compose %v455, %v450
    %v460 = vextract.low.u32 %v459
    %v461 = vextract.high.u32 %v459
    %v462 = vmul.u32 %v455, %v446
    %v463 = vadd.s32 %v458, %v460
    %vm464 = vc.u32 %v458, %v460
    %v465 = vadd.s32 %v461, 1
    %v466 = vsel %vm464, %v465, %v461
    %v467 = vadd.s32 %v462, %v466
    %v468 = vadd.s32 %v467, 536870912
    %v469 = vshrl.u32 %v468, 30
    %v470 = vshll.u32 %v469, 30
    %v471 = vsub.s32 %v467, %v470
    %vm472 = vcmp.lt.s32.totalorder %v471, 0
    %v473 = vsub.s32 0, %v471
    %v474 = vsel %vm472, %v473, %v471
    %v475 = vclz %v474
    %v476 = vsub.s32 %v475, 2
    %vm477 = vcmp.gt.s32.totalorder 0, %v476
    %v478 = vsel %vm477, 0, %v476
    %v479 = vsub.s32 32, %v478
    %v480 = vshll.u32 %v471, %v478
    %v481 = vshrl.u32 %v463, %v479
    %v482 = vor.u32 %v480, %v481
    %v483 = vsub.s32 4294967266, %v478
    %v484 = vadd.s32 %v483, 127
    %v485 = vshll.u32 %v484, 23
    %v486 = vor.u32 4788187, %v485
    %v487 = vand.u32 2147483647, %v486
    %v489 = vcvt.s32.f32 %v482
    %v490 = vmul.f32 %v489, %v487
    %v491 = vxor.u32 %v490, 2147483648
    %v492 = vsel %vm409, %v491, %v490
    %v493 = vsub.s32 4, %v469
    %v494 = vsel %vm409, %v493, %v469
    %v495 = vsel %vm408, %v406, %v492
    %v496 = vsel %vm408, 0, %v494
    %v497 = vcosq.f32.pop %v495
    %v498 = vsinq.f32.pop %v495
    %vm499 = vweird.f32 %v406
    %v500 = vadd.s32 %v496, 3
    %v501 = vand.u32 %v500, 3
    %vm502 = vcmp.lt.s32.totalorder %v501, 2
    %vm503 = vcmp.eq.s32.totalorder %v501, 0
    %v504 = vxor.u32 %v498, 2147483648
    %v505 = vsel %vm503, %v497, %v504
    %vm506 = vcmp.eq.s32.totalorder %v501, 2
    %v507 = vxor.u32 %v497, 2147483648
    %v508 = vsel %vm506, %v507, %v498
    %v509 = vsel %vm502, %v505, %v508
    %v510 = vsel %vm499, nan, %v509
    %v511 = vpack.c.bf16 %v510, %v510
    %s512 = scalar_lea.vmem [#allocation2], 128
    %v513 = vld [vmem:[%s512] sm:$0xf]
    %v514 = vld [vmem:[%s512 + $0x4] sm:$0xf]
    %v515 = vld [vmem:[%s512 + $0x8] sm:$0xf]
    %v516 = vld [vmem:[%s512 + $0xc] sm:$0xf]
    %v517 = vld [vmem:[%s512 + $0x10] sm:$0xf]
    %v518 = vld [vmem:[%s512 + $0x14] sm:$0xf]
    %v519 = vld [vmem:[%s512 + $0x18] sm:$0xf]
    %v520 = vld [vmem:[%s512 + $0x1c] sm:$0xf]
    %v521 = vld [vmem:[%s512 + $0x20] sm:$0xf]
    %v522 = vld [vmem:[%s512 + $0x24] sm:$0xf]
    %v523 = vld [vmem:[%s512 + $0x28] sm:$0xf]
    %v524 = vld [vmem:[%s512 + $0x2c] sm:$0xf]
    %v525 = vld [vmem:[%s512 + $0x30] sm:$0xf]
    %v526 = vld [vmem:[%s512 + $0x34] sm:$0xf]
    %v527 = vld [vmem:[%s512 + $0x38] sm:$0xf]
    %v528 = vld [vmem:[%s512 + $0x3c] sm:$0xf]
    %s529 = scalar_lea.vmem %s2, 4
    %v530 = vld [vmem:[%s529] sm:$0x3]
    %v531 = vlaneseq
    %v532 = vshrl.u32 %v531, 7
    %v533 = vsub.s32 0, %v532
    %v534 = vrot.slane %v530, %v533
    %v551 = vunpack.c.l.b16 %v513
    %v552 = vunpack.c.l.b16 %v514
    %v553 = vunpack.c.l.b16 %v515
    %v554 = vunpack.c.l.b16 %v516
    %v555 = vunpack.c.l.b16 %v517
    %v556 = vunpack.c.l.b16 %v518
    %v557 = vunpack.c.l.b16 %v519
    %v558 = vunpack.c.l.b16 %v520
    %v559 = vunpack.c.l.b16 %v521
    %v560 = vunpack.c.l.b16 %v522
    %v561 = vunpack.c.l.b16 %v523
    %v562 = vunpack.c.l.b16 %v524
    %v563 = vunpack.c.l.b16 %v525
    %v564 = vunpack.c.l.b16 %v526
    %v565 = vunpack.c.l.b16 %v527
    %v566 = vunpack.c.l.b16 %v528
    %v567 = vpack.c.b16 %v552, %v551
    %v568 = vpack.c.b16 %v554, %v553
    %v569 = vpack.c.b16 %v556, %v555
    %v570 = vpack.c.b16 %v558, %v557
    %v571 = vpack.c.b16 %v560, %v559
    %v572 = vpack.c.b16 %v562, %v561
    %v573 = vpack.c.b16 %v564, %v563
    %v574 = vpack.c.b16 %v566, %v565
    %583 = vmatprep.subr.bf16.mxu0 0
    %584 = vmatpush1.bf16.msra.mxu0 %v567
    %585 = vmatprep.subr.bf16.mxu0 0
    %586 = vmatpush1.bf16.msra.mxu0 %v568
    %587 = vmatprep.subr.bf16.mxu0 0
    %588 = vmatpush1.bf16.msra.mxu0 %v569
    %589 = vmatprep.subr.bf16.mxu0 0
    %590 = vmatpush1.bf16.msra.mxu0 %v570
    %591 = vmatprep.subr.bf16.mxu0 0
    %592 = vmatpush1.bf16.msra.mxu0 %v571
    %593 = vmatprep.subr.bf16.mxu0 0
    %594 = vmatpush1.bf16.msra.mxu0 %v572
    %595 = vmatprep.subr.bf16.mxu0 0
    %596 = vmatpush1.bf16.msra.mxu0 %v573
    %597 = vmatprep.subr.bf16.mxu0 0
    %598 = vmatpush1.bf16.msra.mxu0 %v574
    %599 = vmatprep.subr.bf16.mxu0 0
    %600 = vmatpush1.bf16.msra.mxu0 0
    %601 = vmatprep.subr.bf16.mxu0 0
    %602 = vmatpush1.bf16.msra.mxu0 0
    %603 = vmatprep.subr.bf16.mxu0 0
    %604 = vmatpush1.bf16.msra.mxu0 0
    %605 = vmatprep.subr.bf16.mxu0 0
    %606 = vmatpush1.bf16.msra.mxu0 0
    %607 = vmatprep.subr.bf16.mxu0 0
    %608 = vmatpush1.bf16.msra.mxu0 0
    %609 = vmatprep.subr.bf16.mxu0 0
    %610 = vmatpush1.bf16.msra.mxu0 0
    %611 = vmatprep.subr.bf16.mxu0 0
    %612 = vmatpush1.bf16.msra.mxu0 0
    %613 = vmatprep.subr.bf16.mxu0 0
    %614 = vmatpush1.bf16.msra.mxu0 0
    %615 = vmatprep.mubr.bf16.mxu0 0
    %616 = vmatmul.mubr.bf16.gmra.mrb[0].mxu0 %v511
    %v617 = vpop.f32.mrb[0].mxu0
    %v618 = vadd.f32 %v534, %v617
    %v619 = vpop.f32.mrb[0].mxu0
    %v620 = vpop.f32.mrb[0].mxu0
    %v621 = vpop.f32.mrb[0].mxu0
    %622 = vdwg.mxu0
    %623 = vst [vmem:[#allocation5] sm:$0xff] %v618
    // Predicated region
    $region18: #{_forward.1} parent=1 // pred_check
      _
    $region19: #{_forward.1} parent=1 // pred_check_branch
      %625 = sbr.rel (0) target = $region21
    $region20: #{_forward.1} parent=1 // pred_region
      %s627 = ssub.s32 128, 128
      %628 = vsyncadd [#allocation4], %s627
      %s630 = sshll.u32 [#allocation5], 4
      %s631 = int_to_ptr.vmem [resolvable:$true] %s630
      %633 = dma.vmem_to_hbm [thread:$0]  %s631, 128, %s3, [#allocation4]
    $region21: #{_forward.1} parent=1 // pred_fallthru
      _
    // Predicated region
    $region22: #{_forward.1} parent=1 // pred_check
      _
    $region23: #{_forward.1} parent=1 // pred_check_branch
      %635 = sbr.rel (0) target = $region25
    $region24: #{_forward.1} parent=1 // pred_region
      %636 = dma.done [#allocation4], 128
    $region25: #{_forward.1} parent=1 // pred_fallthru
      _
    %637 = vsyncpa [#allocation3], 1
    %638 = vsyncpa [#allocation4], 1

</llo_original>
